<compile_context>
chip_gen: v7x
topology: tpu7x:2x2x1
jax: 0.10.0
libtpu: 0.0.40
codegen_flags: <defaults>
</compile_context>

<pallas_src>
import functools

import jax
import jax.numpy as jnp
from jax.experimental import pallas as pl
from jax.experimental.pallas import tpu as pltpu


_DEFAULT_BLOCK_BYTES = 4 * 1024 * 1024  # per-input VMEM block target (f32, padded rows)


def _sumsq_kernel(x_ref, out_ref, acc_ref, *, dp, td, nk, need_mask, lane_fold):
    """Accumulate sum(x^2) over the lane (D) axis into a (R, 128) slab."""
    k = pl.program_id(0)

    @pl.when(k == 0)
    def _init():
        acc_ref[...] = jnp.zeros_like(acc_ref)

    def accumulate(masked):
        xv = x_ref[...].astype(jnp.float32)
        if masked:
            # Only the ragged last tile pays for the iota / compare / select.
            lane = jax.lax.broadcasted_iota(jnp.int32, xv.shape, 1)
            xv = jnp.where((k * td + lane) < dp, xv, 0.0)
        sq = xv * xv
        if lane_fold:
            # Fold the td//128 lane chunks into one (R, 128) accumulator with
            # statically-sliced VPU adds (vreg-aligned slices, no data
            # movement). A few independent partial chains keep VALU latency
            # off the critical path.
            n_chunks = td // 128
            n_acc = min(4, n_chunks)
            partial = [sq[:, c * 128:(c + 1) * 128] for c in range(n_acc)]
            for c in range(n_acc, n_chunks):
                partial[c % n_acc] = partial[c % n_acc] + sq[:, c * 128:(c + 1) * 128]
            total = acc_ref[...]
            for p in partial:
                total = total + p
            acc_ref[...] = total
        else:
            # Single full-width block that is narrower than / not aligned to
            # 128 lanes (nk == 1 here): one cross-lane reduce, parked in lane 0.
            colsum = jnp.sum(sq, axis=1, keepdims=True)
            lane0 = jax.lax.broadcasted_iota(jnp.int32, acc_ref.shape, 1) == 0
            acc_ref[...] += jnp.where(lane0, colsum, 0.0)

    if need_mask:
        @pl.when(k < nk - 1)
        def _dense():
            accumulate(False)

        @pl.when(k == nk - 1)
        def _ragged_tail():
            accumulate(True)
    else:
        accumulate(False)

    out_ref[...] = acc_ref[...]


def _pick_row_fill(b, d):
    """Smallest divisor S of D with B*S >= 8 (fills sublanes for tiny batches)."""
    if b >= 8 or d < 256:
        return 1
    target = -(-8 // b)                  # ceil(8 / b)
    limit = min(d // 128, 64)            # keep D/S >= 128 and rows modest
    for s in range(target, limit + 1):
        if d % s == 0:
            return s
    for s in range(min(target, limit), 1, -1):
        if d % s == 0:
            return s
    return 1


@functools.partial(jax.jit, static_argnames=("block_bytes",))
def _half_sumsq(x_flat, block_bytes=_DEFAULT_BLOCK_BYTES):
    """0.5 * sum(x^2, axis=1) per sample (B,), computed by the Pallas kernel."""
    b, d = x_flat.shape
    s = _pick_row_fill(b, d)
    r, dp = b * s, d // s
    x = x_flat.reshape(r, dp)            # row-major, metadata-only reshape

    r_pad = -(-r // 8) * 8               # VMEM rows pad to a multiple of 8
    td_cap = max((block_bytes // (r_pad * 4) // 128) * 128, 128)
    if dp % 128 == 0:
        td = min(td_cap, dp)
    elif dp <= td_cap:
        td = dp                          # full-dim block (legal for any width)
    else:
        td = td_cap
    nk = -(-dp // td)                    # cdiv
    need_mask = (dp % td) != 0
    lane_fold = (td % 128) == 0

    kernel = functools.partial(_sumsq_kernel, dp=dp, td=td, nk=nk,
                               need_mask=need_mask, lane_fold=lane_fold)

    out = pl.pallas_call(
        kernel,
        out_shape=jax.ShapeDtypeStruct((r, 128), jnp.float32),
        grid=(nk,),
        in_specs=[pl.BlockSpec((r, td), lambda k: (0, k))],
        out_specs=pl.BlockSpec((r, 128), lambda k: (0, 0)),
        scratch_shapes=[pltpu.VMEM((r, 128), jnp.float32)],
        compiler_params=pltpu.CompilerParams(
            dimension_semantics=("arbitrary",),
            vmem_limit_bytes=32 * 1024 * 1024,
        ),
    )(x)

    per_row = jnp.sum(out, axis=1)                        # (R,)
    return 0.5 * jnp.sum(per_row.reshape(b, s), axis=1)   # (B,)


def nll(sample):
    """JAX/Pallas equivalent of the module-level nll(sample)."""
    if sample.ndim == 2:
        sample = sample[:, :, None, None]
    b = sample.shape[0]
    return _half_sumsq(sample.reshape(b, -1))


def nll_forward(sample, logdet, rng_key, split="train"):
    """JAX/Pallas equivalent of NLL.forward(sample, logdet, split)."""
    assert logdet.ndim == 1
    nll_loss = jnp.mean(nll(sample))
    nlogdet_loss = -jnp.mean(logdet.astype(jnp.float32))
    loss = nll_loss + nlogdet_loss

    # torch.randn_like analog; drawn in the wrapper (decoupled from the x
    # streaming kernel) and reduced by a second call of the same kernel.
    ref_dtype = sample.dtype if jnp.issubdtype(sample.dtype, jnp.floating) else jnp.float32
    reference = jax.random.normal(rng_key, sample.shape, dtype=ref_dtype)
    reference_nll_loss = jnp.mean(nll(reference))

    log = {
        f"{split}/total_loss": loss,
        f"{split}/reference_nll_loss": reference_nll_loss,
        f"{split}/nlogdet_loss": nlogdet_loss,
        f"{split}/nll_loss": nll_loss,
    }
    return loss, log


if __name__ == "__main__":
    key = jax.random.PRNGKey(0)
    k_sample, k_logdet, k_ref, k_ragged, k_small = jax.random.split(key, 5)

    # --- primary: small NCHW sample like the PyTorch module expects --------
    B, C, H, W = 2, 4, 16, 16
    sample = jax.random.normal(k_sample, (B, C, H, W), dtype=jnp.float32)
    logdet = jax.random.normal(k_logdet, (B,), dtype=jnp.float32)

    loss, log = nll_forward(sample, logdet, k_ref, split="train")
    loss = jax.block_until_ready(loss)
    log = {k: jax.block_until_ready(v) for k, v in log.items()}

    x_np = sample.reshape(B, -1)
    expect_nll = jnp.mean(0.5 * jnp.sum(x_np ** 2, axis=1))
    expect_loss = expect_nll - jnp.mean(logdet)
    assert jnp.allclose(loss, expect_loss, rtol=1e-5, atol=1e-4), (loss, expect_loss)
    assert jnp.allclose(log["train/nll_loss"], expect_nll, rtol=1e-5, atol=1e-4)
    assert jnp.allclose(log["train/nlogdet_loss"], -jnp.mean(logdet), rtol=1e-5, atol=1e-5)

    ref_draw = jax.random.normal(k_ref, (B, C, H, W), dtype=jnp.float32)
    expect_ref = jnp.mean(0.5 * jnp.sum(ref_draw.reshape(B, -1) ** 2, axis=1))
    assert jnp.allclose(log["train/reference_nll_loss"], expect_ref,
                        rtol=1e-5, atol=1e-3), (log["train/reference_nll_loss"], expect_ref)

    # --- ragged, multi-tile, masked-tail path (small blocks force it) ------
    x2 = jax.random.normal(k_ragged, (2, 2760), dtype=jnp.float32)
    got = jax.block_until_ready(_half_sumsq(x2, block_bytes=8 * 1024))
    expect = 0.5 * jnp.sum(x2.astype(jnp.float32) ** 2, axis=1)
    assert jnp.allclose(got, expect, rtol=1e-5, atol=1e-3), (got, expect)

    # single full-width (non-128-aligned) block path
    got2 = jax.block_until_ready(_half_sumsq(x2))
    assert jnp.allclose(got2, expect, rtol=1e-5, atol=1e-3), (got2, expect)

    # --- 2D sample path (module unsqueezes to NCHW) -------------------------
    sample2d = jax.random.normal(k_small, (2, 32), dtype=jnp.float32)
    loss2d, _ = nll_forward(sample2d, logdet, k_ref, split="val")
    loss2d = jax.block_until_ready(loss2d)
    expect2d = jnp.mean(0.5 * jnp.sum(sample2d ** 2, axis=1)) - jnp.mean(logdet)
    assert jnp.allclose(loss2d, expect2d, rtol=1e-5, atol=1e-4), (loss2d, expect2d)

    print("KERNEL_OK")
</pallas_src>

<mosaic_0001>
module attributes {stable_mosaic.version = 11 : i64} {
  func.func @_sumsq_kernel(%arg0: i32, %arg1: memref<8x256xf32, #tpu.memory_space<vmem>>, %arg2: memref<8x128xf32, #tpu.memory_space<vmem>>, %arg3: memref<8x128xf32, #tpu.memory_space<vmem>>) attributes {dimension_semantics = [#tpu.dimension_semantics<arbitrary>], iteration_bounds = array<i64: 1>, scalar_prefetch = 0 : i64, scratch_operands = 1 : i64, tpu.core_type = #tpu.core_type<tc>, window_params = [{transform_indices = @transform_0, window_bounds = array<i64: 8, 256>}, {pipeline_mode = #tpu.pipeline_mode<synchronous>, transform_indices = @transform_1, window_bounds = array<i64: 8, 128>}]} {
    %c0_i32 = arith.constant 0 : i32
    %0 = arith.cmpi eq, %arg0, %c0_i32 : i32
    %1 = arith.extui %0 : i1 to i32
    %c0_i32_0 = arith.constant 0 : i32
    %2 = arith.cmpi ne, %1, %c0_i32_0 : i32
    scf.if %2 {
      %cst = arith.constant 0.000000e+00 : f32
      %13 = vector.broadcast %cst : f32 to vector<8x128xf32>
      %c0_10 = arith.constant 0 : index
      %c0_11 = arith.constant 0 : index
      %14 = vector.load %arg3[%c0_10, %c0_11] : memref<8x128xf32, #tpu.memory_space<vmem>>, vector<8x128xf32>
      tpu.vector_store %arg3[%c0_10, %c0_11], %13 {strides = array<i32>} : memref<8x128xf32, #tpu.memory_space<vmem>>, vector<8x128xf32>,
    } else {
    }
    %c0 = arith.constant 0 : index
    %c0_1 = arith.constant 0 : index
    %3 = vector.load %arg1[%c0, %c0_1] : memref<8x256xf32, #tpu.memory_space<vmem>>, vector<8x256xf32>
    %4 = arith.mulf %3, %3 : vector<8x256xf32>
    %5 = vector.extract_strided_slice %4 {offsets = [0, 0], sizes = [8, 128], strides = [1, 1]} : vector<8x256xf32> to vector<8x128xf32>
    %6 = vector.extract_strided_slice %4 {offsets = [0, 128], sizes = [8, 128], strides = [1, 1]} : vector<8x256xf32> to vector<8x128xf32>
    %c0_2 = arith.constant 0 : index
    %c0_3 = arith.constant 0 : index
    %7 = vector.load %arg3[%c0_2, %c0_3] : memref<8x128xf32, #tpu.memory_space<vmem>>, vector<8x128xf32>
    %8 = arith.addf %7, %5 : vector<8x128xf32>
    %9 = arith.addf %8, %6 : vector<8x128xf32>
    %c0_4 = arith.constant 0 : index
    %c0_5 = arith.constant 0 : index
    %10 = vector.load %arg3[%c0_4, %c0_5] : memref<8x128xf32, #tpu.memory_space<vmem>>, vector<8x128xf32>
    tpu.vector_store %arg3[%c0_4, %c0_5], %9 {strides = array<i32>} : memref<8x128xf32, #tpu.memory_space<vmem>>, vector<8x128xf32>,
    %c0_6 = arith.constant 0 : index
    %c0_7 = arith.constant 0 : index
    %11 = vector.load %arg3[%c0_6, %c0_7] : memref<8x128xf32, #tpu.memory_space<vmem>>, vector<8x128xf32>
    %c0_8 = arith.constant 0 : index
    %c0_9 = arith.constant 0 : index
    %12 = vector.load %arg2[%c0_8, %c0_9] : memref<8x128xf32, #tpu.memory_space<vmem>>, vector<8x128xf32>
    tpu.vector_store %arg2[%c0_8, %c0_9], %11 {strides = array<i32>} : memref<8x128xf32, #tpu.memory_space<vmem>>, vector<8x128xf32>,
    return
  }
  func.func @transform_0(%arg0: i32) -> (i32, i32) {
    %c0_i32 = arith.constant 0 : i32
    %c0_i32_0 = arith.constant 0 : i32
    return %c0_i32, %arg0 : i32, i32
  }
  func.func @transform_1(%arg0: i32) -> (i32, i32) {
    %c0_i32 = arith.constant 0 : i32
    %c0_i32_0 = arith.constant 0 : i32
    %c0_i32_1 = arith.constant 0 : i32
    return %c0_i32, %c0_i32_0 : i32, i32
  }
}

</mosaic_0001>

<llo_original>
// kernel: _half_sumsq.1
$region0: #{_half_sumsq.1}
  #allocation0 [shape = 'u32[]', space=smem, size = 0x4, offset = 0x4, fixed_abs, tag = 'smem constant byte address 0x4 - core index']
  #allocation1 [shape = 'u32[144,128]{1,0:T(1,128)}', space=vmem, size = 0x12000, scoped, tag = 'internal scratch']
  #allocation2 [shape = 'f32[8,128]{1,0:T(8,128)}', space=vmem, size = 0x1000, scoped, tag = 'scratch operand']
  %s0 = inlined_call_operand.vmem [shape: f32[8,256], index: 0, kind: input, shape index: {}]
  %s1 = inlined_call_operand.vmem [shape: f32[8,128], index: 1, kind: output, shape index: {}]
  %s2 = sld [smem:[#allocation0]]
  $region18: #{_half_sumsq.1} parent=0
    _
  %s4 = ssub.s32 1, %s2
  %s5 = scalar_select 0, %s4, %s2
  // Predicated region
  $region2: #{_half_sumsq.1} parent=0 // pred_check
    _
  $region3: #{_half_sumsq.1} parent=0 // pred_check_branch
    %7 = sbr.rel (0) target = $region5
  $region4: #{_half_sumsq.1} parent=0 // pred_region
    _
  $region5: #{_half_sumsq.1} parent=0 // pred_fallthru
    _
  %p8 = scmp.eq.s32.totalorder 0, 0
  // Predicated region
  $region6: #{_half_sumsq.1} parent=0 // pred_check
    %p9 = pneg %p8
  $region7: #{_half_sumsq.1} parent=0 // pred_check_branch
    %11 = sbr.rel (%p9) target = $region9
  $region8: #{_half_sumsq.1} parent=0 // pred_region
    %12 = vst [vmem:[#allocation2] sm:$0xff] 0.0
  $region9: #{_half_sumsq.1} parent=0 // pred_fallthru
    _
  %v13 = vld [vmem:[%s0] sm:$0xff]
  %v14 = vld [vmem:[%s0 + $0x8] sm:$0xff]
  %v15 = vmul.f32 %v13, %v13
  %v16 = vmul.f32 %v14, %v14
  %v17 = vld [vmem:[#allocation2] sm:$0xff]
  %v18 = vadd.f32 %v17, %v15
  %v19 = vadd.f32 %v18, %v16
  %20 = vst [vmem:[#allocation2] sm:$0xff] %v19
  %v21 = vld [vmem:[#allocation2] sm:$0xff]
  %22 = vst [vmem:[%s1] sm:$0xff] %v21
  // Predicated region
  $region10: #{_half_sumsq.1} parent=0 // pred_check
    _
  $region11: #{_half_sumsq.1} parent=0 // pred_check_branch
    %24 = sbr.rel (0) target = $region13
  $region12: #{_half_sumsq.1} parent=0 // pred_region
    _
  $region13: #{_half_sumsq.1} parent=0 // pred_fallthru
    _
  // Predicated region
  $region14: #{_half_sumsq.1} parent=0 // pred_check
    _
  $region15: #{_half_sumsq.1} parent=0 // pred_check_branch
    %26 = sbr.rel (0) target = $region17
  $region16: #{_half_sumsq.1} parent=0 // pred_region
    _
  $region17: #{_half_sumsq.1} parent=0 // pred_fallthru
    _

</llo_original>
